<compile_context>
chip_gen: v7x
topology: tpu7x:2x2x1
jax: 0.10.0
libtpu: 0.0.40
codegen_flags: <defaults>
</compile_context>

<pallas_src>
import functools

import jax
import jax.numpy as jnp
from jax.experimental import pallas as pl
from jax.experimental.pallas import tpu as pltpu

_LANE = 128
_SUBLANE = 8
_RESIDENT_FACTOR = 6          # ~bytes-per-element multiplier for blocks + temps
_SERIAL_BLOCK_BYTES = 2 * 1024 * 1024   # above this, a grid-of-1 block is routed
                                        # to the pipelined two-pass path


def _detect_tpu():
    """(physical VMEM bytes, is_v5e) with safe fallbacks."""
    kind = ""
    try:
        kind = jax.devices()[0].device_kind.lower()
    except Exception:
        pass
    vmem = None
    try:
        vmem = int(pltpu.get_tpu_info().vmem_capacity_bytes)
    except Exception:
        vmem = None
    if vmem is None or vmem <= 0:
        if ("v5" in kind) or ("v6" in kind):
            vmem = 128 * 1024 * 1024
        else:
            vmem = 64 * 1024 * 1024          # conservative (v7x / unknown)
    is_v5e = ("v5 lite" in kind) or ("v5e" in kind) or ("v5lite" in kind)
    return vmem, is_v5e


_PHYS_VMEM, _IS_V5E = _detect_tpu()
# ~48 MiB limit / 32 MiB block budget on v7x (64 MiB physical VMEM),
# ~96 MiB limit / 64 MiB block budget on v5e / v6e (128 MiB physical VMEM).
_VMEM_LIMIT_BYTES = min((_PHYS_VMEM * 3) // 4, 100 * 1024 * 1024)
_VMEM_BLOCK_BUDGET = (_VMEM_LIMIT_BYTES * 2) // 3


def _round_up(x, m):
    return ((x + m - 1) // m) * m


def _elementwise_dtype(x):
    # v6e/v7x have bf16 VPU/EUP datapaths; v5e does not (bf16 elementwise would
    # only add pack/unpack VALU work), so compute the gate in f32 there.
    if x.dtype == jnp.bfloat16 and not _IS_V5E:
        return jnp.bfloat16
    return jnp.float32


def _pick_feature_tile(d, rows, itemsize, min_tile=_LANE, prefer_full=False):
    """Largest multiple-of-128 divisor of `d` (d a multiple of 128) that fits
    the VMEM budget with `rows` resident rows.  Unless `prefer_full`, keep
    >= 4 grid steps when d >= 512 (each v7x TC still gets >= 2 pipelined steps
    after megacore sharding) and >= 2 steps when d >= 256."""
    min_tile = min(min_tile, d)
    bytes_per_col = _RESIDENT_FACTOR * rows * max(int(itemsize), 4)
    cap = (_VMEM_BLOCK_BUDGET // max(bytes_per_col, 1)) // _LANE * _LANE
    cap = min(max(cap, _LANE), d)
    if prefer_full and cap >= d:
        return d
    if not prefer_full:
        if d >= 4 * _LANE:
            cap = min(cap, (d // 4) // _LANE * _LANE)
        elif d >= 2 * _LANE:
            cap = min(cap, (d // 2) // _LANE * _LANE)
    cap = max(cap, min_tile)
    best = _LANE
    t = _LANE
    while t <= cap:
        if d % t == 0:
            best = t
        t += _LANE
    return best


def _pick_batch_tile(n_rows, td, itemsize, max_batch_rows=None):
    bytes_per_row = _RESIDENT_FACTOR * td * max(int(itemsize), 4)
    tb = _VMEM_BLOCK_BUDGET // max(bytes_per_row, 1)
    if max_batch_rows is not None:
        tb = min(tb, int(max_batch_rows))
    tb = min(tb, n_rows)
    tb = max(_SUBLANE, (tb // _SUBLANE) * _SUBLANE)
    if n_rows % tb != 0:
        # Prefer an exact divisor (no row padding), but never shrink > 2x for it.
        for cand in range(tb, max(_SUBLANE, tb // 2) - 1, -_SUBLANE):
            if n_rows % cand == 0:
                return cand
    return tb


# --------------------------- Dice kernels -----------------------------------


def _dice_fullbatch_kernel(x_ref, alpha_ref, o_ref, *, eps):
    """One feature tile, full batch resident: BN stats are block-local."""
    x = x_ref[...]                                       # (B, TD), native dtype
    xf = x.astype(jnp.float32)
    mean = jnp.mean(xf, axis=0, keepdims=True)           # (1, TD)
    diff = xf - mean
    var = jnp.mean(diff * diff, axis=0, keepdims=True)   # biased variance
    x_hat = diff * jax.lax.rsqrt(var + eps)

    ew = _elementwise_dtype(x)
    p = jax.nn.sigmoid(x_hat.astype(ew))
    alpha = alpha_ref[...].astype(ew)                    # (1, TD), broadcast
    gate = alpha + p * (1.0 - alpha)                     # == p + alpha*(1-p)
    o_ref[...] = (x.astype(ew) * gate).astype(o_ref.dtype)


def _dice_stats_kernel(x_ref, sum_ref, sumsq_ref):
    """Pass 1 (batch-tiled path): accumulate per-feature sum(x) and sum(x^2)."""
    @pl.when(pl.program_id(1) == 0)
    def _init():
        sum_ref[...] = jnp.zeros_like(sum_ref)
        sumsq_ref[...] = jnp.zeros_like(sumsq_ref)

    xf = x_ref[...].astype(jnp.float32)                  # (TB, TD)
    sum_ref[...] += jnp.sum(xf, axis=0, keepdims=True)
    sumsq_ref[...] += jnp.sum(xf * xf, axis=0, keepdims=True)


def _dice_apply_kernel(x_ref, sum_ref, sumsq_ref, alpha_ref, o_ref, *, eps, n_rows):
    """Pass 2: normalize with precomputed batch stats and apply the Dice gate."""
    x = x_ref[...]                                       # (TB, TD)
    xf = x.astype(jnp.float32)
    inv_n = 1.0 / float(n_rows)                          # true batch size (padding-safe)
    mean = sum_ref[...] * inv_n                          # (1, TD)
    ex2 = sumsq_ref[...] * inv_n
    # NOTE: E[x^2]-mean^2 can cancel for large-mean activations; fine for
    # zero-ish-mean MLP activations (tests use 1e-4 tolerance).
    var = jnp.maximum(ex2 - mean * mean, 0.0)            # biased variance
    x_hat = (xf - mean) * jax.lax.rsqrt(var + eps)

    ew = _elementwise_dtype(x)
    p = jax.nn.sigmoid(x_hat.astype(ew))
    alpha = alpha_ref[...].astype(ew)
    gate = alpha + p * (1.0 - alpha)
    o_ref[...] = (x.astype(ew) * gate).astype(o_ref.dtype)


def _dice_single_pass(x, alpha2, eps, td):
    B, D = x.shape
    itemsize = jnp.dtype(x.dtype).itemsize
    n_ft = max(D // td, 1)
    cost = pl.CostEstimate(
        flops=int(10 * B * D),
        transcendentals=int(B * D),
        bytes_accessed=int(2 * B * D * itemsize + 2 * D * itemsize),
    )
    return pl.pallas_call(
        functools.partial(_dice_fullbatch_kernel, eps=eps),
        out_shape=jax.ShapeDtypeStruct((B, D), x.dtype),
        grid_spec=pltpu.PrefetchScalarGridSpec(
            num_scalar_prefetch=0,
            grid=(n_ft,),
            in_specs=[
                pl.BlockSpec((B, td), lambda j: (0, j)),   # X: full batch, one feature tile
                pl.BlockSpec((1, td), lambda j: (0, j)),   # alpha tile
            ],
            out_specs=pl.BlockSpec((B, td), lambda j: (0, j)),
        ),
        compiler_params=pltpu.CompilerParams(
            dimension_semantics=("parallel",),
            vmem_limit_bytes=_VMEM_LIMIT_BYTES,
        ),
        cost_estimate=cost,
    )(x, alpha2)


def _dice_two_pass(x, alpha2, eps, max_batch_rows=None):
    B, D = x.shape
    itemsize = jnp.dtype(x.dtype).itemsize
    lane_dense = (D % _LANE == 0)
    if lane_dense:
        # >= 512 B DMA row chunks (td >= 256 for bf16); prefer full-width rows.
        min_td = max(_LANE, ((512 // max(itemsize, 1)) // _LANE) * _LANE)
        td = _pick_feature_tile(D, rows=512, itemsize=itemsize,
                                min_tile=min_td, prefer_full=True)
    else:
        td = D
    tb = _pick_batch_tile(B, td, itemsize, max_batch_rows)
    b_pad = _round_up(B, tb)
    x_p = jnp.pad(x, ((0, b_pad - B), (0, 0))) if b_pad != B else x
    n_ft = D // td if lane_dense else 1
    n_bt = b_pad // tb

    # Pass 1: per-feature sum / sum-of-squares accumulated over batch tiles
    # (reduction axis last in the grid, marked "arbitrary").
    stats_cost = pl.CostEstimate(
        flops=int(3 * b_pad * D),
        transcendentals=0,
        bytes_accessed=int(b_pad * D * itemsize + 2 * D * 4),
    )
    sums, sumsqs = pl.pallas_call(
        _dice_stats_kernel,
        out_shape=(jax.ShapeDtypeStruct((1, D), jnp.float32),
                   jax.ShapeDtypeStruct((1, D), jnp.float32)),
        grid_spec=pltpu.PrefetchScalarGridSpec(
            num_scalar_prefetch=0,
            grid=(n_ft, n_bt),
            in_specs=[pl.BlockSpec((tb, td), lambda f, b: (b, f))],
            out_specs=(pl.BlockSpec((1, td), lambda f, b: (0, f)),
                       pl.BlockSpec((1, td), lambda f, b: (0, f))),
        ),
        compiler_params=pltpu.CompilerParams(
            dimension_semantics=("parallel", "arbitrary"),
            vmem_limit_bytes=_VMEM_LIMIT_BYTES,
        ),
        cost_estimate=stats_cost,
    )(x_p)

    # Pass 2: normalize with the batch stats (divide by the TRUE batch size so
    # zero row-padding does not bias mean / E[x^2]) and apply the gate.
    apply_cost = pl.CostEstimate(
        flops=int(12 * b_pad * D),
        transcendentals=int(b_pad * D),
        bytes_accessed=int(2 * b_pad * D * itemsize + 3 * D * 4),
    )
    out = pl.pallas_call(
        functools.partial(_dice_apply_kernel, eps=eps, n_rows=B),
        out_shape=jax.ShapeDtypeStruct((b_pad, D), x.dtype),
        grid_spec=pltpu.PrefetchScalarGridSpec(
            num_scalar_prefetch=0,
            grid=(n_ft, n_bt),
            in_specs=[
                pl.BlockSpec((tb, td), lambda f, b: (b, f)),
                pl.BlockSpec((1, td), lambda f, b: (0, f)),
                pl.BlockSpec((1, td), lambda f, b: (0, f)),
                pl.BlockSpec((1, td), lambda f, b: (0, f)),
            ],
            out_specs=pl.BlockSpec((tb, td), lambda f, b: (b, f)),
        ),
        compiler_params=pltpu.CompilerParams(
            dimension_semantics=("parallel", "parallel"),
            vmem_limit_bytes=_VMEM_LIMIT_BYTES,
        ),
        cost_estimate=apply_cost,
    )(x_p, sums, sumsqs, alpha2)
    return out[:B] if b_pad != B else out


def dice(x, alpha, eps=1e-9, max_batch_rows=None):
    """Dice activation matching PyTorch Dice.forward with training-mode
    BatchNorm1d statistics (affine=False, biased variance).  x: (B, D), alpha: (D,).

    No wrapper-side feature padding: lane-dense D uses multiple-of-128 tiles,
    other D uses a single full-width block (masked stores). `max_batch_rows`
    caps resident rows per block; if smaller than B it forces the two-pass path.
    """
    B, D = x.shape
    itemsize = jnp.dtype(x.dtype).itemsize
    alpha2 = jnp.reshape(alpha.astype(x.dtype), (1, D))

    lane_dense = (D % _LANE == 0)
    td = _pick_feature_tile(D, B, itemsize) if lane_dense else D
    n_ft = D // td if lane_dense else 1

    resident = _RESIDENT_FACTOR * B * td * max(itemsize, 4)
    fits_single = resident <= _VMEM_BLOCK_BUDGET
    if max_batch_rows is not None:
        fits_single = fits_single and B <= int(max_batch_rows)
    # A single-tile grid has no DMA/compute overlap (and uses only one v7x TC);
    # large single-block cases go to the pipelined batch-tiled two-pass path.
    serial_ok = (n_ft >= 2) or (B * td * itemsize <= _SERIAL_BLOCK_BYTES)

    if fits_single and serial_ok:
        return _dice_single_pass(x, alpha2, eps, td)
    return _dice_two_pass(x, alpha2, eps, max_batch_rows)


def dice_ref(x, alpha, eps=1e-9):
    """Pure-JAX reference for Dice.forward (training-mode BatchNorm1d)."""
    x32 = x.astype(jnp.float32)
    mean = jnp.mean(x32, axis=0, keepdims=True)
    var = jnp.mean((x32 - mean) ** 2, axis=0, keepdims=True)
    x_hat = (x32 - mean) / jnp.sqrt(var + eps)
    p = jax.nn.sigmoid(x_hat)
    out = p * x32 + alpha[None, :].astype(jnp.float32) * (1.0 - p) * x32
    return out.astype(x.dtype)


# ------------------- masked softmax + weighted pooling kernel ----------------


def _attn_pool_kernel(scores_ref, mask_ref, behavior_ref, o_ref):
    """softmax(scores - (1-mask)*1e9, axis=1), then weighted sum over L."""
    s = scores_ref[...].astype(jnp.float32)              # (TB, L)
    m = mask_ref[...].astype(jnp.float32)                # (TB, L)
    s = s - (1.0 - m) * 1e9
    s = s - jnp.max(s, axis=1, keepdims=True)
    e = jnp.exp(s)
    w = e / jnp.sum(e, axis=1, keepdims=True)            # softmax over L
    beh = behavior_ref[...]                               # (TB, L, Dm), native dtype
    prod = beh * w.astype(beh.dtype)[:, :, None]          # multiply in input dtype
    pooled = jnp.sum(prod, axis=1, dtype=jnp.float32)     # (TB, Dm), f32 accumulate
    o_ref[...] = pooled.astype(o_ref.dtype)


def attention_pool(scores, mask, user_behavior, max_batch_rows=None):
    """AttentionPoolingLayer tail: (user_behavior * attns).sum(dim=1)."""
    B, L, Dm = user_behavior.shape
    itemsize = jnp.dtype(user_behavior.dtype).itemsize
    # Resident bytes per batch row: behavior block (double-buffered, native
    # dtype) + one f32 temporary of the same shape + scores/mask/output.
    per_row = L * Dm * (2 * itemsize + 4) + (2 * L + Dm) * (itemsize + 8)
    tb = max(1, _VMEM_BLOCK_BUDGET // max(per_row, 1))
    if max_batch_rows is not None:
        tb = min(tb, int(max_batch_rows))
    tb = min(tb, B, 1024)
    if tb < B:
        tb = max(_SUBLANE, (tb // _SUBLANE) * _SUBLANE)
        n_blk = pl.cdiv(B, tb)
        tb = _round_up(pl.cdiv(B, n_blk), _SUBLANE)       # balanced blocks, small pad
    b_pad = _round_up(B, tb)
    if b_pad != B:
        scores = jnp.pad(scores, ((0, b_pad - B), (0, 0)))
        mask = jnp.pad(mask, ((0, b_pad - B), (0, 0)))
        user_behavior = jnp.pad(user_behavior, ((0, b_pad - B), (0, 0), (0, 0)))

    cost = pl.CostEstimate(
        flops=int(8 * b_pad * L + 3 * b_pad * L * Dm),
        transcendentals=int(b_pad * L),
        bytes_accessed=int((b_pad * L * Dm + b_pad * Dm) * itemsize + 2 * b_pad * L * 4),
    )
    out = pl.pallas_call(
        _attn_pool_kernel,
        out_shape=jax.ShapeDtypeStruct((b_pad, Dm), user_behavior.dtype),
        grid_spec=pltpu.PrefetchScalarGridSpec(
            num_scalar_prefetch=0,
            grid=(b_pad // tb,),
            in_specs=[
                pl.BlockSpec((tb, L), lambda i: (i, 0)),
                pl.BlockSpec((tb, L), lambda i: (i, 0)),
                pl.BlockSpec((tb, L, Dm), lambda i: (i, 0, 0)),
            ],
            out_specs=pl.BlockSpec((tb, Dm), lambda i: (i, 0)),
        ),
        compiler_params=pltpu.CompilerParams(
            dimension_semantics=("parallel",),
            vmem_limit_bytes=_VMEM_LIMIT_BYTES,
        ),
        cost_estimate=cost,
    )(scores, mask, user_behavior)
    return out[:B] if b_pad != B else out


# -------------------- full AttentionPoolingLayer forward ---------------------


def init_attention_pooling_params(key, embedding_dim, pad_to_lane=True):
    """Parameters of AttentionPoolingLayer(embedding_dim, dropout).

    fc layer widths are zero-padded to a multiple of 128 (lane-dense Dice,
    unmasked stores); zero columns/rows are exact no-ops through Linear + Dice
    and free on the MXU.  Note the module's sizing quirk: ActivationUnit's
    first Linear takes embedding_dim*4*2 inputs, which requires the behavior /
    query feature size (model_dim) to equal 2*embedding_dim.
    """
    model_dim = 2 * embedding_dim
    fc_dims = [embedding_dim // 2, embedding_dim // 4]
    prev_true = 4 * model_dim          # first input dim is NEVER padded (it is
    prev_pad = 4 * model_dim           # split into 4 Dm-chunks for concat fusion)
    fc = []
    for dout in fc_dims:
        dout_pad = _round_up(dout, _LANE) if pad_to_lane else dout
        key, kw, kb = jax.random.split(key, 3)
        bound = 1.0 / (prev_true ** 0.5)
        w = jax.random.uniform(kw, (prev_true, dout), jnp.float32, -bound, bound)
        b = jax.random.uniform(kb, (dout,), jnp.float32, -bound, bound)
        w_full = jnp.zeros((prev_pad, dout_pad), jnp.float32).at[:prev_true, :dout].set(w)
        b_full = jnp.zeros((dout_pad,), jnp.float32).at[:dout].set(b)
        alpha_full = jnp.zeros((dout_pad,), jnp.float32)   # Dice.alpha init (zeros)
        fc.append((w_full, b_full, alpha_full))
        prev_true, prev_pad = dout, dout_pad
    key, kw, kb = jax.random.split(key, 3)
    bound = 1.0 / (prev_true ** 0.5)
    w_out = jax.random.uniform(kw, (prev_true, 1), jnp.float32, -bound, bound)
    b_out = jax.random.uniform(kb, (1,), jnp.float32, -bound, bound)
    w_out_full = jnp.zeros((prev_pad, 1), jnp.float32).at[:prev_true].set(w_out)
    return {"fc": fc, "out": (w_out_full, b_out)}


def activation_unit_scores(query, user_behavior, params, use_pallas=True):
    """ActivationUnit.forward up to the raw attention logits, shape (B, L)."""
    B, L, Dm = user_behavior.shape
    q = query.reshape(B, Dm)
    dice_fn = dice if use_pallas else dice_ref

    w0, b0, alpha0 = params["fc"][0]
    if use_pallas:
        # Fold the [q, beh, q-beh, q*beh] concat into the first Linear:
        #   concat @ [W1;W2;W3;W4] = q@(W1+W3) + beh@(W2-W3) + (q*beh)@W4
        # -> never materializes the (B, L, 4*Dm) concat tensor in HBM.
        w1, w2, w3, w4 = jnp.split(w0, 4, axis=0)
        x = ((q @ (w1 + w3))[:, None, :]
             + user_behavior @ (w2 - w3)
             + (user_behavior * q[:, None, :]) @ w4
             + b0)
        x = x.reshape(B * L, -1)
    else:
        queries = jnp.broadcast_to(q[:, None, :], (B, L, Dm))
        attn_input = jnp.concatenate(
            [queries, user_behavior, queries - user_behavior,
             queries * user_behavior], axis=-1)
        x = attn_input.reshape(B * L, 4 * Dm) @ w0 + b0

    x = dice_fn(x, alpha0)
    # TODO(synk): nn.Dropout skipped (identity at inference; stochastic in training).
    for w, b, alpha in params["fc"][1:]:
        x = x @ w + b                                    # nn.Linear (MXU via XLA)
        x = dice_fn(x, alpha)                            # Dice (Pallas kernel)
    w_out, b_out = params["out"]
    return (x @ w_out + b_out).reshape(B, L)


def attention_pooling_forward(query_ad, user_behavior, mask, params, use_pallas=True):
    """AttentionPoolingLayer.forward: attention-weighted sum of user_behavior."""
    B, L, Dm = user_behavior.shape
    scores = activation_unit_scores(query_ad, user_behavior, params, use_pallas)
    m = mask.reshape(B, L).astype(jnp.float32)
    if use_pallas:
        return attention_pool(scores, m, user_behavior)
    s = scores - (1.0 - m) * 1e9
    w = jax.nn.softmax(s, axis=1)
    return jnp.sum(w[:, :, None] * user_behavior, axis=1)


# ----------------------------------- main ------------------------------------

if __name__ == "__main__":
    key = jax.random.PRNGKey(0)

    # 1) Standalone Dice kernel checks (the module's custom op).
    # (a) single-pass path, 2 "parallel" feature tiles (D multiple of 128)
    k1, k2, k3, k4, key = jax.random.split(key, 5)
    x1 = jax.random.normal(k1, (64, 256), jnp.float32)
    a1 = 0.1 * jax.random.normal(k2, (256,), jnp.float32)
    o1 = jax.block_until_ready(dice(x1, a1))
    assert jnp.allclose(o1, dice_ref(x1, a1), atol=1e-5, rtol=1e-5)

    # (b) D not a multiple of 128 -> single full-width block (no pad/slice)
    x2 = jax.random.normal(k3, (48, 200), jnp.float32)
    a2 = 0.1 * jax.random.normal(k4, (200,), jnp.float32)
    o2 = jax.block_until_ready(dice(x2, a2))
    assert jnp.allclose(o2, dice_ref(x2, a2), atol=1e-5, rtol=1e-5)

    # (c) batch-tiled two-pass path (forced small batch tile to exercise it)
    o3 = jax.block_until_ready(dice(x1, a1, max_batch_rows=16))
    assert jnp.allclose(o3, dice_ref(x1, a1), atol=1e-4, rtol=1e-4)

    # (d) bf16 I/O path (f32 stats; bf16 gate on v6e/v7x, f32 gate on v5e)
    x4 = x1.astype(jnp.bfloat16)
    o4 = jax.block_until_ready(dice(x4, a1))
    assert jnp.allclose(o4.astype(jnp.float32),
                        dice_ref(x4, a1).astype(jnp.float32),
                        atol=5e-2, rtol=5e-2)

    # 2) Standalone masked-softmax pooling with a tiled/padded batch.
    kq1, kb1, key = jax.random.split(key, 3)
    sc = jax.random.normal(kq1, (20, 16), jnp.float32)
    beh = jax.random.normal(kb1, (20, 16, 128), jnp.float32)
    lens = (jnp.arange(20) % 16) + 1
    msk = (jnp.arange(16)[None, :] < lens[:, None]).astype(jnp.float32)
    op = jax.block_until_ready(attention_pool(sc, msk, beh, max_batch_rows=8))
    wref = jax.nn.softmax(sc - (1.0 - msk) * 1e9, axis=1)
    pref = jnp.sum(wref[:, :, None] * beh, axis=1)
    assert jnp.allclose(op, pref, atol=1e-4, rtol=1e-4)

    # 3) Full AttentionPoolingLayer forward at small DIN-like shapes.
    embedding_dim, B, L = 16, 4, 8
    model_dim = 2 * embedding_dim                 # required by the module's Linear sizing
    kq, kb_, key = jax.random.split(key, 3)
    query_ad = jax.random.normal(kq, (B, 1, model_dim), jnp.float32)
    user_behavior = jax.random.normal(kb_, (B, L, model_dim), jnp.float32)
    lengths = jnp.array([8, 5, 3, 1])
    mask = (jnp.arange(L)[None, :] < lengths[:, None]).astype(jnp.float32)[..., None]

    params = init_attention_pooling_params(jax.random.PRNGKey(0), embedding_dim)
    out = jax.block_until_ready(
        attention_pooling_forward(query_ad, user_behavior, mask, params, use_pallas=True))
    ref = attention_pooling_forward(query_ad, user_behavior, mask, params, use_pallas=False)
    assert out.shape == (B, model_dim) and out.dtype == user_behavior.dtype
    assert jnp.allclose(out, ref, atol=1e-4, rtol=1e-4)

    print("KERNEL_OK")
</pallas_src>

<mosaic_0001>
module attributes {stable_mosaic.version = 11 : i64} {
  func.func @_dice_fullbatch_kernel(%arg0: i32, %arg1: memref<64x128xf32, #tpu.memory_space<vmem>>, %arg2: memref<1x128xf32, #tpu.memory_space<vmem>>, %arg3: memref<64x128xf32, #tpu.memory_space<vmem>>) attributes {dimension_semantics = [#tpu.dimension_semantics<parallel>], iteration_bounds = array<i64: 2>, scalar_prefetch = 0 : i64, scratch_operands = 0 : i64, tpu.core_type = #tpu.core_type<tc>, window_params = [{transform_indices = @transform_0, window_bounds = array<i64: 64, 128>}, {transform_indices = @transform_1, window_bounds = array<i64: 1, 128>}, {transform_indices = @transform_2, window_bounds = array<i64: 64, 128>}]} {
    %c0 = arith.constant 0 : index
    %c0_0 = arith.constant 0 : index
    %0 = vector.load %arg1[%c0, %c0_0] : memref<64x128xf32, #tpu.memory_space<vmem>>, vector<64x128xf32>
    %cst = arith.constant dense<0.000000e+00> : vector<128xf32>
    %1 = vector.multi_reduction <add>, %0, %cst [0] : vector<64x128xf32> to vector<128xf32>
    %2 = vector.shape_cast %1 : vector<128xf32> to vector<1x128xf32>
    %cst_1 = arith.constant 6.400000e+01 : f32
    %3 = vector.broadcast %cst_1 : f32 to vector<1x128xf32>
    %4 = arith.divf %2, %3 : vector<1x128xf32>
    %5 = vector.broadcast %4 : vector<1x128xf32> to vector<64x128xf32>
    %6 = arith.subf %0, %5 : vector<64x128xf32>
    %7 = arith.mulf %6, %6 : vector<64x128xf32>
    %cst_2 = arith.constant dense<0.000000e+00> : vector<128xf32>
    %8 = vector.multi_reduction <add>, %7, %cst_2 [0] : vector<64x128xf32> to vector<128xf32>
    %9 = vector.shape_cast %8 : vector<128xf32> to vector<1x128xf32>
    %cst_3 = arith.constant 6.400000e+01 : f32
    %10 = vector.broadcast %cst_3 : f32 to vector<1x128xf32>
    %11 = arith.divf %9, %10 : vector<1x128xf32>
    %cst_4 = arith.constant 9.99999971E-10 : f32
    %12 = vector.broadcast %cst_4 : f32 to vector<1x128xf32>
    %13 = arith.addf %11, %12 : vector<1x128xf32>
    %14 = math.rsqrt %13 : vector<1x128xf32>
    %15 = vector.broadcast %14 : vector<1x128xf32> to vector<64x128xf32>
    %16 = arith.mulf %6, %15 : vector<64x128xf32>
    %17 = arith.negf %16 : vector<64x128xf32>
    %18 = math.exp %17 : vector<64x128xf32>
    %cst_5 = arith.constant 1.000000e+00 : f32
    %19 = vector.broadcast %cst_5 : f32 to vector<64x128xf32>
    %20 = arith.addf %19, %18 : vector<64x128xf32>
    %21 = arith.divf %19, %20 : vector<64x128xf32>
    %c0_6 = arith.constant 0 : index
    %c0_7 = arith.constant 0 : index
    %22 = vector.load %arg2[%c0_6, %c0_7] : memref<1x128xf32, #tpu.memory_space<vmem>>, vector<1x128xf32>
    %cst_8 = arith.constant 1.000000e+00 : f32
    %23 = vector.broadcast %cst_8 : f32 to vector<1x128xf32>
    %24 = arith.subf %23, %22 : vector<1x128xf32>
    %25 = vector.broadcast %24 : vector<1x128xf32> to vector<64x128xf32>
    %26 = arith.mulf %21, %25 : vector<64x128xf32>
    %27 = vector.broadcast %22 : vector<1x128xf32> to vector<64x128xf32>
    %28 = arith.addf %27, %26 : vector<64x128xf32>
    %29 = arith.mulf %0, %28 : vector<64x128xf32>
    %c0_9 = arith.constant 0 : index
    %c0_10 = arith.constant 0 : index
    %30 = vector.load %arg3[%c0_9, %c0_10] : memref<64x128xf32, #tpu.memory_space<vmem>>, vector<64x128xf32>
    tpu.vector_store %arg3[%c0_9, %c0_10], %29 {strides = array<i32>} : memref<64x128xf32, #tpu.memory_space<vmem>>, vector<64x128xf32>,
    return
  }
  func.func @transform_0(%arg0: i32) -> (i32, i32) {
    %c0_i32 = arith.constant 0 : i32
    %c0_i32_0 = arith.constant 0 : i32
    return %c0_i32, %arg0 : i32, i32
  }
  func.func @transform_1(%arg0: i32) -> (i32, i32) {
    %c0_i32 = arith.constant 0 : i32
    %c0_i32_0 = arith.constant 0 : i32
    return %c0_i32, %arg0 : i32, i32
  }
  func.func @transform_2(%arg0: i32) -> (i32, i32) {
    %c0_i32 = arith.constant 0 : i32
    %c0_i32_0 = arith.constant 0 : i32
    return %c0_i32, %arg0 : i32, i32
  }
}

</mosaic_0001>

<llo_original>
// kernel: tpu_custom_call.1
$region0: #{tpu_custom_call.1}
  #allocation0 [shape = 'u32[]', space=smem, size = 0x4, offset = 0x4, fixed_abs, tag = 'smem constant byte address 0x4 - core index']
  #allocation1 [shape = 'u32[144,128]{1,0:T(1,128)}', space=vmem, size = 0x12000, scoped, tag = 'internal scratch']
  %s0 = inlined_call_operand.hbm [shape: f32[64,256], index: 0, kind: input, shape index: {}]
  %s1 = inlined_call_operand.vmem [shape: f32[1,256], index: 1, kind: input, shape index: {}]
  %s2 = inlined_call_operand.hbm [shape: f32[64,256], index: 2, kind: output, shape index: {}]
  %s3 = sld [smem:[#allocation0]]
  $region45: #{tpu_custom_call.1} parent=0
    _
  %s5 = ssub.s32 1, %s3
  %s6 = scalar_select 0, %s5, %s3
  $region1: #{tpu_custom_call.1} parent=0
    #allocation2 [shape = 'u8[65536]{0}', space=vmem, size = 0x10000, scoped, tag = 'input window, operand 0']
    #allocation3 [shape = 's32[2]{0}', space=sflag, size = 0x8, scoped, tag = 'scoped memory for tpu_custom_call.1']
    #allocation4 [shape = 's32[2]{0}', space=sflag, size = 0x8, scoped, tag = 'scoped memory for tpu_custom_call.1']
    #allocation5 [shape = 'u8[65536]{0}', space=vmem, size = 0x10000, scoped, tag = 'output window, operand 0']
    %7 = vsyncpa [#allocation3], 0
    %s8 = scalar_lea.sflag [#allocation3], 1
    %9 = vsyncpa %s8, 0
    %10 = vsyncpa [#allocation4], 0
    %s11 = scalar_lea.sflag [#allocation4], 1
    %12 = vsyncpa %s11, 0
    loop: start=0, step=1, limit=4
    $region2: #{tpu_custom_call.1} parent=1 // loop_pre_header
      _
    $region3: #{tpu_custom_call.1} parent=1 // loop_header
      %s14 = sphi 0, %s18
      %p15 = scmp.ge.s32.totalorder %s14, 4
      %s24 = sphi 0, %s26
      %s27 = sphi 0, %s24
      %s28 = sphi 0, %s27
      %s44 = sphi 0, %s28
      %s50 = sphi 0, %s52
      %s53 = sphi 0, %s50
      %s54 = sphi 0, %s53
      %s70 = sphi 0, %s54
      %s76 = sphi 0, %s78
      %s79 = sphi 0, %s76
      %s80 = sphi 0, %s79
      %s96 = sphi 0, %s80
    $region4: #{tpu_custom_call.1} parent=1 // loop_header_branch
      %17 = sbr.rel (%p15) target = $region8
    $region5: #{tpu_custom_call.1} parent=1 // loop_body
      %s19 = ssub.s32 %s14, 1
      %s20 = ssub.s32 %s14, 2
      %s21 = sadd.s32 %s14, 1
      %s22 = ssub.s32 %s14, %s21
      %p23 = scmp.eq.s32.totalorder %s22, 0
      %s25 = sadd.s32 %s24, 1
      %s26 = scalar_select %p23, %s24, %s25
      %p29 = pneg %p23
      %p30 = scmp.eq.s32.totalorder %s14, 1
      %p31 = por %p29, %p30
      %p32 = scmp.ne.s32.totalorder %s24, %s27
      %p33 = scmp.eq.s32.totalorder %s14, 0
      %p34 = por %p32, %p33
      %p35 = scmp.ne.s32.totalorder %s24, %s27
      %p36 = scmp.eq.s32.totalorder %s19, 1
      %p37 = por %p35, %p36
      %p38 = scmp.ne.s32.totalorder %s27, %s28
      %p39 = scmp.eq.s32.totalorder %s19, 0
      %p40 = por %p38, %p39
      %p41 = scmp.ne.s32.totalorder %s27, %s28
      %p42 = scmp.eq.s32.totalorder %s20, 1
      %p43 = por %p41, %p42
      %p45 = scmp.ne.s32.totalorder %s28, %s44
      %p46 = scmp.eq.s32.totalorder %s20, 0
      %p47 = por %p45, %p46
      %s48 = ssub.s32 %s14, %s21
      %p49 = scmp.eq.s32.totalorder %s48, 0
      %s51 = sadd.s32 %s50, 1
      %s52 = scalar_select %p49, %s50, %s51
      %p55 = pneg %p49
      %p56 = scmp.eq.s32.totalorder %s14, 1
      %p57 = por %p55, %p56
      %p58 = scmp.ne.s32.totalorder %s50, %s53
      %p59 = scmp.eq.s32.totalorder %s14, 0
      %p60 = por %p58, %p59
      %p61 = scmp.ne.s32.totalorder %s50, %s53
      %p62 = scmp.eq.s32.totalorder %s19, 1
      %p63 = por %p61, %p62
      %p64 = scmp.ne.s32.totalorder %s53, %s54
      %p65 = scmp.eq.s32.totalorder %s19, 0
      %p66 = por %p64, %p65
      %p67 = scmp.ne.s32.totalorder %s53, %s54
      %p68 = scmp.eq.s32.totalorder %s20, 1
      %p69 = por %p67, %p68
      %p71 = scmp.ne.s32.totalorder %s54, %s70
      %p72 = scmp.eq.s32.totalorder %s20, 0
      %p73 = por %p71, %p72
      %s74 = ssub.s32 %s14, %s21
      %p75 = scmp.eq.s32.totalorder %s74, 0
      %s77 = sadd.s32 %s76, 1
      %s78 = scalar_select %p75, %s76, %s77
      %p81 = pneg %p75
      %p82 = scmp.eq.s32.totalorder %s14, 1
      %p83 = por %p81, %p82
      %p84 = scmp.ne.s32.totalorder %s76, %s79
      %p85 = scmp.eq.s32.totalorder %s14, 0
      %p86 = por %p84, %p85
      %p87 = scmp.ne.s32.totalorder %s76, %s79
      %p88 = scmp.eq.s32.totalorder %s19, 1
      %p89 = por %p87, %p88
      %p90 = scmp.ne.s32.totalorder %s79, %s80
      %p91 = scmp.eq.s32.totalorder %s19, 0
      %p92 = por %p90, %p91
      %p93 = scmp.ne.s32.totalorder %s79, %s80
      %p94 = scmp.eq.s32.totalorder %s20, 1
      %p95 = por %p93, %p94
      %p97 = scmp.ne.s32.totalorder %s80, %s96
      %p98 = scmp.eq.s32.totalorder %s20, 0
      %p99 = por %p97, %p98
      %p100 = scmp.le.s32.totalorder 1, %s14
      %p101 = scmp.lt.s32.totalorder %s14, 3
      %p102 = pnand %p100, %p101
      %p103 = pneg %p102
      // Predicated region
      $region9: #{tpu_custom_call.1} parent=5 // pred_check
        _
      $region10: #{tpu_custom_call.1} parent=5 // pred_check_branch
        %105 = sbr.rel (%p102) target = $region12
      $region11: #{tpu_custom_call.1} parent=5 // pred_region
        %s106 = ssub.s32 %s14, 1
      $region12: #{tpu_custom_call.1} parent=5 // pred_fallthru
        _
      %p107 = scmp.lt.s32.totalorder %s14, 2
      // Predicated region
      $region13: #{tpu_custom_call.1} parent=5 // pred_check
        %p108 = pneg %p107
      $region14: #{tpu_custom_call.1} parent=5 // pred_check_branch
        %110 = sbr.rel (%p108) target = $region16
      $region15: #{tpu_custom_call.1} parent=5 // pred_region
        // Predicated region
        $region17: #{tpu_custom_call.1} parent=15 // pred_check
          %p111 = pneg %p34
        $region18: #{tpu_custom_call.1} parent=15 // pred_check_branch
          %113 = sbr.rel (%p111) target = $region20
        $region19: #{tpu_custom_call.1} parent=15 // pred_region
          %s114 = sand.u32 %s24, 1
          %s115 = scalar_lea.sflag [#allocation3], %s114
          %s116 = sand.u32 %s24, 1
          %s117 = smul.addr %s116, 64
          %s118 = scalar_lea.vmem [#allocation2], %s117
          %s120 = ssub.s32 1024, 1024
          %121 = vsyncadd %s115, %s120
          %s122 = smul.addr %s14, 128
          %s123 = scalar_lea.hbm %s0, %s122
          %s124 = sshll.u32 %s118, 4
          %s125 = int_to_ptr.vmem [resolvable:$true] %s124
          %130 = dma.hbm_to_vmem [thread:$0]  %s123, 1024, %s125, %s115, 256, 128, 8
        $region20: #{tpu_custom_call.1} parent=15 // pred_fallthru
          _
        // Predicated region
        $region21: #{tpu_custom_call.1} parent=15 // pred_check
          %p131 = pneg %p60
        $region22: #{tpu_custom_call.1} parent=15 // pred_check_branch
          %133 = sbr.rel (%p131) target = $region24
        $region23: #{tpu_custom_call.1} parent=15 // pred_region
          %p134 = scmp.lt.s32.totalorder %s14, 1
          %s135 = scalar_select %p134, %s14, 1
          %s136 = scalar_lea.vmem %s1, %s135
        $region24: #{tpu_custom_call.1} parent=15 // pred_fallthru
          _
      $region16: #{tpu_custom_call.1} parent=5 // pred_fallthru
        _
      %p137 = scmp.le.s32.totalorder 1, %s14
      %p138 = scmp.lt.s32.totalorder %s14, 3
      %p139 = pnand %p137, %p138
      %p140 = pneg %p139
      // Predicated region
      $region25: #{tpu_custom_call.1} parent=5 // pred_check
        _
      $region26: #{tpu_custom_call.1} parent=5 // pred_check_branch
        %142 = sbr.rel (%p139) target = $region28
      $region27: #{tpu_custom_call.1} parent=5 // pred_region
        %s143 = ssub.s32 %s14, 1
        %s144 = sand.u32 %s27, 1
        %s145 = scalar_lea.sflag [#allocation3], %s144
        %s146 = sand.u32 %s27, 1
        %s147 = smul.addr %s146, 64
        %s148 = scalar_lea.vmem [#allocation2], %s147
        // Predicated region
        $region29: #{tpu_custom_call.1} parent=27 // pred_check
          %p149 = pneg %p40
        $region30: #{tpu_custom_call.1} parent=27 // pred_check_branch
          %151 = sbr.rel (%p149) target = $region32
        $region31: #{tpu_custom_call.1} parent=27 // pred_region
          %152 = dma.done %s145, 1024
        $region32: #{tpu_custom_call.1} parent=27 // pred_fallthru
          _
        %s153 = sand.u32 %s27, 1
        %s154 = scalar_lea.sflag [#allocation3], %s153
        %s155 = sand.u32 %s27, 1
        %s156 = smul.addr %s155, 64
        %s157 = scalar_lea.vmem [#allocation2], %s156
        %p158 = pneg %p40
        %p159 = pneg %p37
        %p160 = scmp.lt.s32.totalorder %s19, 1
        %s161 = scalar_select %p160, %s19, 1
        %s162 = scalar_lea.vmem %s1, %s161
        %p163 = pneg %p66
        %p164 = pneg %p63
        %p165 = pneg %p92
        %p166 = pneg %p89
        %s167 = sand.u32 %s79, 1
        %s168 = scalar_lea.sflag [#allocation4], %s167
        %s169 = sand.u32 %s79, 1
        %s170 = smul.addr %s169, 64
        %s171 = scalar_lea.vmem [#allocation5], %s170
        %p172 = scmp.lt.s32.totalorder %s19, 1
        %s173 = scalar_select %p172, %s19, 1
        %s174 = scalar_lea.vmem %s1, %s173
        %v175 = vld [vmem:[%s148] sm:$0xff]
        %v176 = vld [vmem:[%s148 + $0x8] sm:$0xff]
        %v177 = vld [vmem:[%s148 + $0x10] sm:$0xff]
        %v178 = vld [vmem:[%s148 + $0x18] sm:$0xff]
        %v179 = vld [vmem:[%s148 + $0x20] sm:$0xff]
        %v180 = vld [vmem:[%s148 + $0x28] sm:$0xff]
        %v181 = vld [vmem:[%s148 + $0x30] sm:$0xff]
        %v182 = vld [vmem:[%s148 + $0x38] sm:$0xff]
        %v183 = vadd.f32 %v175, %v176
        %v184 = vadd.f32 %v183, %v177
        %v185 = vadd.f32 %v184, %v178
        %v186 = vadd.f32 %v185, %v179
        %v187 = vadd.f32 %v186, %v180
        %v188 = vadd.f32 %v187, %v181
        %v189 = vadd.f32 %v188, %v182
        %v190 = vrot.slane %v189, 4
        %v191 = vadd.f32 %v189, %v190
        %v192 = vrot.slane %v191, 2
        %v193 = vadd.f32 %v191, %v192
        %v194 = vrot.slane %v193, 1
        %v195 = vadd.f32 %v193, %v194
        %v196 = vrcp.pop 64.0
        %v197 = vmul.f32 %v195, %v196
        %v198 = vsub.f32 %v175, %v197
        %v199 = vsub.f32 %v176, %v197
        %v200 = vsub.f32 %v177, %v197
        %v201 = vsub.f32 %v178, %v197
        %v202 = vsub.f32 %v179, %v197
        %v203 = vsub.f32 %v180, %v197
        %v204 = vsub.f32 %v181, %v197
        %v205 = vsub.f32 %v182, %v197
        %v206 = vmul.f32 %v198, %v198
        %v207 = vmul.f32 %v199, %v199
        %v208 = vmul.f32 %v200, %v200
        %v209 = vmul.f32 %v201, %v201
        %v210 = vmul.f32 %v202, %v202
        %v211 = vmul.f32 %v203, %v203
        %v212 = vmul.f32 %v204, %v204
        %v213 = vmul.f32 %v205, %v205
        %v214 = vadd.f32 %v206, %v207
        %v215 = vadd.f32 %v214, %v208
        %v216 = vadd.f32 %v215, %v209
        %v217 = vadd.f32 %v216, %v210
        %v218 = vadd.f32 %v217, %v211
        %v219 = vadd.f32 %v218, %v212
        %v220 = vadd.f32 %v219, %v213
        %v221 = vrot.slane %v220, 4
        %v222 = vadd.f32 %v220, %v221
        %v223 = vrot.slane %v222, 2
        %v224 = vadd.f32 %v222, %v223
        %v225 = vrot.slane %v224, 1
        %v226 = vadd.f32 %v224, %v225
        %v227 = vmul.f32 %v226, %v196
        %v228 = vadd.f32 %v227, 1e-09
        %v229 = vrsqrt.pop %v228
        %v230 = vmul.f32 %v198, %v229
        %v231 = vmul.f32 %v199, %v229
        %v232 = vmul.f32 %v200, %v229
        %v233 = vmul.f32 %v201, %v229
        %v234 = vmul.f32 %v202, %v229
        %v235 = vmul.f32 %v203, %v229
        %v236 = vmul.f32 %v204, %v229
        %v237 = vmul.f32 %v205, %v229
        %v238 = vxor.u32 %v230, 2147483648
        %v239 = vxor.u32 %v231, 2147483648
        %v240 = vxor.u32 %v232, 2147483648
        %v241 = vxor.u32 %v233, 2147483648
        %v242 = vxor.u32 %v234, 2147483648
        %v243 = vxor.u32 %v235, 2147483648
        %v244 = vxor.u32 %v236, 2147483648
        %v245 = vxor.u32 %v237, 2147483648
        %v246 = vmul.f32 %v238, 1.442695
        %v247 = vpow.pop %v246
        %v248 = vmul.f32 %v239, 1.442695
        %v249 = vpow.pop %v248
        %v250 = vmul.f32 %v240, 1.442695
        %v251 = vpow.pop %v250
        %v252 = vmul.f32 %v241, 1.442695
        %v253 = vpow.pop %v252
        %v254 = vmul.f32 %v242, 1.442695
        %v255 = vpow.pop %v254
        %v256 = vmul.f32 %v243, 1.442695
        %v257 = vpow.pop %v256
        %v258 = vmul.f32 %v244, 1.442695
        %v259 = vpow.pop %v258
        %v260 = vmul.f32 %v245, 1.442695
        %v261 = vpow.pop %v260
        %v262 = vadd.f32 %v247, 1.0
        %v263 = vadd.f32 %v249, 1.0
        %v264 = vadd.f32 %v251, 1.0
        %v265 = vadd.f32 %v253, 1.0
        %v266 = vadd.f32 %v255, 1.0
        %v267 = vadd.f32 %v257, 1.0
        %v268 = vadd.f32 %v259, 1.0
        %v269 = vadd.f32 %v261, 1.0
        %v270 = vrcp.pop %v262
        %v271 = vmul.f32 1.0, %v270
        %v272 = vrcp.pop %v263
        %v273 = vmul.f32 1.0, %v272
        %v274 = vrcp.pop %v264
        %v275 = vmul.f32 1.0, %v274
        %v276 = vrcp.pop %v265
        %v277 = vmul.f32 1.0, %v276
        %v278 = vrcp.pop %v266
        %v279 = vmul.f32 1.0, %v278
        %v280 = vrcp.pop %v267
        %v281 = vmul.f32 1.0, %v280
        %v282 = vrcp.pop %v268
        %v283 = vmul.f32 1.0, %v282
        %v284 = vrcp.pop %v269
        %v285 = vmul.f32 1.0, %v284
        %v286 = vld [vmem:[%s174] sm:$0x1]
        %v287 = vsub.f32 1.0, %v286
        %v289 = vlaneseq
        %v290 = vshrl.u32 %v289, 7
        %v291 = vsub.s32 0, %v290
        %v292 = vrot.slane %v287, %v291
        %v294 = vmul.f32 %v271, %v292
        %v295 = vmul.f32 %v273, %v292
        %v296 = vmul.f32 %v275, %v292
        %v297 = vmul.f32 %v277, %v292
        %v298 = vmul.f32 %v279, %v292
        %v299 = vmul.f32 %v281, %v292
        %v300 = vmul.f32 %v283, %v292
        %v301 = vmul.f32 %v285, %v292
        %v303 = vlaneseq
        %v304 = vshrl.u32 %v303, 7
        %v305 = vsub.s32 0, %v304
        %v306 = vrot.slane %v286, %v305
        %v308 = vadd.f32 %v306, %v294
        %v309 = vadd.f32 %v306, %v295
        %v310 = vadd.f32 %v306, %v296
        %v311 = vadd.f32 %v306, %v297
        %v312 = vadd.f32 %v306, %v298
        %v313 = vadd.f32 %v306, %v299
        %v314 = vadd.f32 %v306, %v300
        %v315 = vadd.f32 %v306, %v301
        %v316 = vmul.f32 %v175, %v308
        %v317 = vmul.f32 %v176, %v309
        %v318 = vmul.f32 %v177, %v310
        %v319 = vmul.f32 %v178, %v311
        %v320 = vmul.f32 %v179, %v312
        %v321 = vmul.f32 %v180, %v313
        %v322 = vmul.f32 %v181, %v314
        %v323 = vmul.f32 %v182, %v315
        %324 = vst [vmem:[%s171] sm:$0xff] %v316
        %325 = vst [vmem:[%s171 + $0x8] sm:$0xff] %v317
        %326 = vst [vmem:[%s171 + $0x10] sm:$0xff] %v318
        %327 = vst [vmem:[%s171 + $0x18] sm:$0xff] %v319
        %328 = vst [vmem:[%s171 + $0x20] sm:$0xff] %v320
        %329 = vst [vmem:[%s171 + $0x28] sm:$0xff] %v321
        %330 = vst [vmem:[%s171 + $0x30] sm:$0xff] %v322
        %331 = vst [vmem:[%s171 + $0x38] sm:$0xff] %v323
        %s332 = sand.u32 %s79, 1
        %s333 = scalar_lea.sflag [#allocation4], %s332
        %s334 = sand.u32 %s79, 1
        %s335 = smul.addr %s334, 64
        %s336 = scalar_lea.vmem [#allocation5], %s335
        // Predicated region
        $region33: #{tpu_custom_call.1} parent=27 // pred_check
          %p337 = pneg %p89
        $region34: #{tpu_custom_call.1} parent=27 // pred_check_branch
          %339 = sbr.rel (%p337) target = $region36
        $region35: #{tpu_custom_call.1} parent=27 // pred_region
          %s341 = ssub.s32 1024, 1024
          %342 = vsyncadd %s333, %s341
          %s343 = smul.addr %s19, 128
          %s344 = scalar_lea.hbm %s2, %s343
          %s345 = sshll.u32 %s336, 4
          %s346 = int_to_ptr.vmem [resolvable:$true] %s345
          %351 = dma.vmem_to_hbm [thread:$0]  %s346, 1024, %s344, %s333, 128, 256, 8
        $region36: #{tpu_custom_call.1} parent=27 // pred_fallthru
          _
      $region28: #{tpu_custom_call.1} parent=5 // pred_fallthru
        _
      %p352 = scmp.le.s32.totalorder 2, %s14
      // Predicated region
      $region37: #{tpu_custom_call.1} parent=5 // pred_check
        %p353 = pneg %p352
      $region38: #{tpu_custom_call.1} parent=5 // pred_check_branch
        %355 = sbr.rel (%p353) target = $region40
      $region39: #{tpu_custom_call.1} parent=5 // pred_region
        %s356 = ssub.s32 %s14, 2
        // Predicated region
        $region41: #{tpu_custom_call.1} parent=39 // pred_check
          %p357 = pneg %p95
        $region42: #{tpu_custom_call.1} parent=39 // pred_check_branch
          %359 = sbr.rel (%p357) target = $region44
        $region43: #{tpu_custom_call.1} parent=39 // pred_region
          %s360 = sand.u32 %s80, 1
          %s361 = scalar_lea.sflag [#allocation4], %s360
          %s362 = sand.u32 %s80, 1
          %s363 = smul.addr %s362, 64
          %s364 = scalar_lea.vmem [#allocation5], %s363
          %365 = dma.done %s361, 1024
        $region44: #{tpu_custom_call.1} parent=39 // pred_fallthru
          _
      $region40: #{tpu_custom_call.1} parent=5 // pred_fallthru
        _
    $region6: #{tpu_custom_call.1} parent=1 // loop_footer
      %s18 = sadd.s32 1, %s14
    $region7: #{tpu_custom_call.1} parent=1 // loop_footer_branch
      %13 = sbr.rel target = $region3
    $region8: #{tpu_custom_call.1} parent=1 // loop_exit
      _
    %366 = vsyncpa [#allocation3], 1
    %s367 = scalar_lea.sflag [#allocation3], 1
    %368 = vsyncpa %s367, 1
    %369 = vsyncpa [#allocation4], 1
    %s370 = scalar_lea.sflag [#allocation4], 1
    %371 = vsyncpa %s370, 1

</llo_original>
